<compile_context>
chip_gen: v7x
topology: tpu7x:2x2x1
jax: 0.10.0
libtpu: 0.0.40
codegen_flags: <defaults>
</compile_context>

<pallas_src>
import math
from functools import partial

import jax
import jax.numpy as jnp
import numpy as np
from jax.experimental import pallas as pl
from jax.experimental.pallas import tpu as pltpu  # noqa: F401  (TPU backend)


# ----------------------------------------------------------------------------
# Shared helper
# ----------------------------------------------------------------------------
def _lstm_gates(gates, c_prev, H):
    """PyTorch LSTMCell gate order: i, f, g, o."""
    i = jax.nn.sigmoid(gates[:, 0 * H:1 * H])
    f = jax.nn.sigmoid(gates[:, 1 * H:2 * H])
    g = jnp.tanh(gates[:, 2 * H:3 * H])
    o = jax.nn.sigmoid(gates[:, 3 * H:4 * H])
    c_new = f * c_prev + i * g
    h_new = o * jnp.tanh(c_new)
    return h_new, c_new


# ----------------------------------------------------------------------------
# Kernel 1: batched input projections (off the serial path)
# ----------------------------------------------------------------------------
def _xproj_kernel(x_ref, w_ref, b_ref, o_ref):
    # x:(S*B, Din)  w:(Din, 12H)  b:(1, 12H)  ->  o:(S*B, 12H)
    o_ref[...] = (jnp.dot(x_ref[...], w_ref[...],
                          preferred_element_type=jnp.float32) + b_ref[...])


# ----------------------------------------------------------------------------
# Kernel 2: the recurrence (whole sequence, one invocation)
# ----------------------------------------------------------------------------
def _recurrent_kernel(xproj_ref,
                      h1_0, c1_0, h2_0, c2_0, h3_0, c3_0,
                      wh1, wh12, wh2, wh23, wh3,
                      h3_seq, h1_f, c1_f, h2_f, c2_f, h3_f, c3_f):
    S = xproj_ref.shape[0]
    H = wh1.shape[0]
    dot = lambda a, b: jnp.dot(a, b, preferred_element_type=jnp.float32)

    # Running h/c state lives in the final-state output refs (VMEM resident).
    h1_f[...] = h1_0[...]
    c1_f[...] = c1_0[...]
    h2_f[...] = h2_0[...]
    c2_f[...] = c2_0[...]
    h3_f[...] = h3_0[...]
    c3_f[...] = c3_0[...]

    @pl.loop(0, S)
    def _(t):
        xp = xproj_ref[t]                                  # (B, 12H) precomputed
        h1 = h1_f[...]; c1 = c1_f[...]
        h2 = h2_f[...]; c2 = c2_f[...]
        h3 = h3_f[...]; c3 = c3_f[...]

        # LSTM1: input = x_t (x-projection already folded into xp)
        g1 = xp[:, 0 * H:4 * H] + dot(h1, wh1[...])
        h1, c1 = _lstm_gates(g1, c1, H)

        # LSTM2: input = cat(x_t, h1) -> split matmuls, no concat on serial path
        g2 = xp[:, 4 * H:8 * H] + dot(h1, wh12[...]) + dot(h2, wh2[...])
        h2, c2 = _lstm_gates(g2, c2, H)

        # LSTM3: input = cat(x_t, h2)
        g3 = xp[:, 8 * H:12 * H] + dot(h2, wh23[...]) + dot(h3, wh3[...])
        h3, c3 = _lstm_gates(g3, c3, H)

        h1_f[...] = h1; c1_f[...] = c1
        h2_f[...] = h2; c2_f[...] = c2
        h3_f[...] = h3; c3_f[...] = c3
        h3_seq[t] = h3                                     # per-step h3 out


# ----------------------------------------------------------------------------
# Kernel 3: all 7 MDN heads, one lane-dense fused matmul
# ----------------------------------------------------------------------------
def _heads_kernel(h_ref, w_ref, b_ref, o_ref, *, G, NOUT):
    # h:(R, H)  w:(H, NOUT_PAD)  b:(1, NOUT_PAD)  ->  o:(R, NOUT_PAD)
    lin = (jnp.dot(h_ref[...], w_ref[...],
                   preferred_element_type=jnp.float32) + b_ref[...])

    e = jax.nn.sigmoid(-lin[:, 0:1])                       # == 1/(1+exp(x))
    pi_lin = lin[:, 1:1 + G]
    pi_max = jnp.max(pi_lin, axis=-1, keepdims=True)
    pi_exp = jnp.exp(pi_lin - pi_max)
    pi = pi_exp * pl.reciprocal(jnp.sum(pi_exp, axis=-1, keepdims=True),
                                approx=True)
    mu1 = lin[:, 1 + G:1 + 2 * G]
    mu2 = lin[:, 1 + 2 * G:1 + 3 * G]
    sig1 = jnp.exp(lin[:, 1 + 3 * G:1 + 4 * G])
    sig2 = jnp.exp(lin[:, 1 + 4 * G:1 + 5 * G])
    ro = jnp.tanh(lin[:, 1 + 5 * G:1 + 6 * G])

    segs = [e, pi, mu1, mu2, sig1, sig2, ro]
    if o_ref.shape[1] > NOUT:
        segs.append(lin[:, NOUT:])                         # zero padding columns
    o_ref[...] = jnp.concatenate(segs, axis=1)             # single 128-wide store


# ----------------------------------------------------------------------------
# Wrapper
# ----------------------------------------------------------------------------
def unconditional_forward(x, prev_state, params):
    """x: (seq, batch, input_dim) f32.  Returns (e, pi, mu1, mu2, sig1, sig2,
    ro, prev_state) with head tensors in (batch, seq, feat), matching PyTorch."""
    S, B, Din = x.shape
    H = params["wh1"].shape[0]
    G = params["wpi"].shape[1]
    NOUT = 1 + 6 * G
    NOUT_PAD = ((NOUT + 127) // 128) * 128

    if prev_state is None:
        z = jnp.zeros((B, H), jnp.float32)
        prev_state = (z, z, z, z, z, z)

    # -- 1) input projections for ALL timesteps: one (S*B, Din)x(Din, 12H) matmul
    wx_all = jnp.concatenate([params["wx1"], params["wx2"], params["wx3"]], axis=1)
    b_all = jnp.concatenate([params["b1"], params["b2"], params["b3"]], axis=1)
    xproj2d = pl.pallas_call(
        _xproj_kernel,
        out_shape=jax.ShapeDtypeStruct((S * B, 12 * H), jnp.float32),
    )(x.reshape(S * B, Din), wx_all, b_all)
    xproj = xproj2d.reshape(S, B, 12 * H)

    # -- 2) recurrence: single kernel invocation, pl.loop over the sequence
    rec_out_shape = ([jax.ShapeDtypeStruct((S, B, H), jnp.float32)]
                     + [jax.ShapeDtypeStruct((B, H), jnp.float32)] * 6)
    rec_outs = pl.pallas_call(
        _recurrent_kernel,
        out_shape=rec_out_shape,
    )(xproj, *prev_state,
      params["wh1"], params["wh12"], params["wh2"],
      params["wh23"], params["wh3"])
    h3_seq = rec_outs[0]
    state = tuple(rec_outs[1:])

    # -- 3) MDN heads: pre-sum the 3x-replicated weights, fuse all heads into
    #       one (H, 128) matrix + bias row, one batched matmul over S*B rows.
    def fold(w):  # (3H, out) -> (H, out): hidden_out == cat(h3, h3, h3)
        return w[:H] + w[H:2 * H] + w[2 * H:3 * H]

    w_heads = jnp.concatenate(
        [fold(params["we"]), fold(params["wpi"]), fold(params["wmu1"]),
         fold(params["wmu2"]), fold(params["wsig1"]), fold(params["wsig2"]),
         fold(params["wro"])], axis=1)                     # (H, 1+6G)
    b_heads = jnp.concatenate(
        [params["be"], params["bpi"], params["bmu1"], params["bmu2"],
         params["bsig1"], params["bsig2"], params["bro"]], axis=1)
    pad = NOUT_PAD - NOUT
    if pad:
        w_heads = jnp.pad(w_heads, ((0, 0), (0, pad)))
        b_heads = jnp.pad(b_heads, ((0, 0), (0, pad)))

    heads2d = pl.pallas_call(
        partial(_heads_kernel, G=G, NOUT=NOUT),
        out_shape=jax.ShapeDtypeStruct((S * B, NOUT_PAD), jnp.float32),
    )(h3_seq.reshape(S * B, H), w_heads, b_heads)
    heads = heads2d.reshape(S, B, NOUT_PAD)

    tr = lambda a: jnp.transpose(a, (1, 0, 2))             # -> (batch, seq, feat)
    e = tr(heads[:, :, 0:1])
    pi = tr(heads[:, :, 1:1 + G])
    mu1 = tr(heads[:, :, 1 + G:1 + 2 * G])
    mu2 = tr(heads[:, :, 1 + 2 * G:1 + 3 * G])
    sig1 = tr(heads[:, :, 1 + 3 * G:1 + 4 * G])
    sig2 = tr(heads[:, :, 1 + 4 * G:1 + 5 * G])
    ro = tr(heads[:, :, 1 + 5 * G:1 + 6 * G])
    return e, pi, mu1, mu2, sig1, sig2, ro, state


# ----------------------------------------------------------------------------
# Deterministic parameter init (shapes per the PyTorch __init__)
# ----------------------------------------------------------------------------
def init_params(key, input_dim=3, hidden_dim=32, n_gauss=20):
    H = hidden_dim
    ks = iter(jax.random.split(key, 40))

    def u(shape, bound):
        return jax.random.uniform(next(ks), shape, jnp.float32, -bound, bound)

    bnd = 1.0 / math.sqrt(H)

    def lstm(in_size):
        return (u((4 * H, in_size), bnd), u((4 * H, H), bnd),
                u((4 * H,), bnd), u((4 * H,), bnd))

    w_ih1, w_hh1, b_ih1, b_hh1 = lstm(input_dim)
    w_ih2, w_hh2, b_ih2, b_hh2 = lstm(input_dim + H)
    w_ih3, w_hh3, b_ih3, b_hh3 = lstm(input_dim + H)

    def linear(out_dim):
        in_dim = 3 * H
        bound = 1.0 / math.sqrt(in_dim)
        return u((out_dim, in_dim), bound), u((out_dim,), bound)

    we, be = linear(1)
    wpi, bpi = linear(n_gauss)
    wmu1, bmu1 = linear(n_gauss)
    wmu2, bmu2 = linear(n_gauss)
    wsig1, bsig1 = linear(n_gauss)
    wsig2, bsig2 = linear(n_gauss)
    wro, bro = linear(n_gauss)

    return {
        # LSTM weights stored transposed (in, 4H) for right-matmul; the
        # cat(x, h) inputs of LSTM2/3 are expressed as split matmuls.
        "wx1": w_ih1.T, "wh1": w_hh1.T, "b1": (b_ih1 + b_hh1)[None, :],
        "wx2": w_ih2[:, :input_dim].T, "wh12": w_ih2[:, input_dim:].T,
        "wh2": w_hh2.T, "b2": (b_ih2 + b_hh2)[None, :],
        "wx3": w_ih3[:, :input_dim].T, "wh23": w_ih3[:, input_dim:].T,
        "wh3": w_hh3.T, "b3": (b_ih3 + b_hh3)[None, :],
        "we": we.T, "be": be[None, :],
        "wpi": wpi.T, "bpi": bpi[None, :],
        "wmu1": wmu1.T, "bmu1": bmu1[None, :],
        "wmu2": wmu2.T, "bmu2": bmu2[None, :],
        "wsig1": wsig1.T, "bsig1": bsig1[None, :],
        "wsig2": wsig2.T, "bsig2": bsig2[None, :],
        "wro": wro.T, "bro": bro[None, :],
    }


# ----------------------------------------------------------------------------
# Pure-JAX reference (for correctness check only)
# ----------------------------------------------------------------------------
def reference_forward(x, prev_state, p):
    S, B, Din = x.shape
    H = p["wh1"].shape[0]
    if prev_state is None:
        z = jnp.zeros((B, H), jnp.float32)
        prev_state = (z, z, z, z, z, z)
    h1, c1, h2, c2, h3, c3 = prev_state
    hs = []
    for t in range(S):
        x_t = x[t]
        g1 = x_t @ p["wx1"] + h1 @ p["wh1"] + p["b1"]
        h1, c1 = _lstm_gates(g1, c1, H)
        g2 = x_t @ p["wx2"] + h1 @ p["wh12"] + h2 @ p["wh2"] + p["b2"]
        h2, c2 = _lstm_gates(g2, c2, H)
        g3 = x_t @ p["wx3"] + h2 @ p["wh23"] + h3 @ p["wh3"] + p["b3"]
        h3, c3 = _lstm_gates(g3, c3, H)
        hs.append(h3)
    h3_seq = jnp.stack(hs, 0)                       # (S, B, H)
    hid = jnp.concatenate([h3_seq] * 3, -1)         # (S, B, 3H)
    e = 1.0 / (1.0 + jnp.exp(hid @ p["we"] + p["be"]))
    pi = jax.nn.softmax(hid @ p["wpi"] + p["bpi"], axis=-1)
    mu1 = hid @ p["wmu1"] + p["bmu1"]
    mu2 = hid @ p["wmu2"] + p["bmu2"]
    sig1 = jnp.exp(hid @ p["wsig1"] + p["bsig1"])
    sig2 = jnp.exp(hid @ p["wsig2"] + p["bsig2"])
    ro = jnp.tanh(hid @ p["wro"] + p["bro"])
    tr = lambda a: jnp.transpose(a, (1, 0, 2))
    return (tr(e), tr(pi), tr(mu1), tr(mu2), tr(sig1), tr(sig2), tr(ro),
            (h1, c1, h2, c2, h3, c3))


# ----------------------------------------------------------------------------
if __name__ == "__main__":
    key = jax.random.PRNGKey(0)
    k_param, k_x = jax.random.split(key)

    # Small shapes consistent with the module: seq=8, batch=2, input_dim=3,
    # hidden=32 (stand-in for 400), num_mix_gaussian=20.
    S, B, Din, H, G = 8, 2, 3, 32, 20
    params = init_params(k_param, input_dim=Din, hidden_dim=H, n_gauss=G)
    x = jax.random.normal(k_x, (S, B, Din), jnp.float32)

    outs = unconditional_forward(x, None, params)
    outs = jax.block_until_ready(outs)

    refs = reference_forward(x, None, params)
    flat_o = jax.tree_util.tree_leaves(outs)
    flat_r = jax.tree_util.tree_leaves(refs)
    for o, r in zip(flat_o, flat_r):
        assert o.shape == r.shape, (o.shape, r.shape)
        assert np.allclose(np.asarray(o), np.asarray(r), atol=5e-2, rtol=5e-2), \
            float(np.max(np.abs(np.asarray(o) - np.asarray(r))))

    print("KERNEL_OK")

    # TODO(synk): prediction_loss / generate_samples / multibivariate_sampling
    # (Bernoulli + MultivariateNormal sampling) are not part of forward() and
    # are not implemented as kernels.
</pallas_src>

<mosaic_0001>
module attributes {stable_mosaic.version = 11 : i64} {
  func.func @_xproj_kernel(%arg0: memref<16x3xf32, #tpu.memory_space<vmem>>, %arg1: memref<3x384xf32, #tpu.memory_space<vmem>>, %arg2: memref<1x384xf32, #tpu.memory_space<vmem>>, %arg3: memref<16x384xf32, #tpu.memory_space<vmem>>) attributes {dimension_semantics = [], scalar_prefetch = 0 : i64, scratch_operands = 0 : i64, tpu.core_type = #tpu.core_type<tc>} {
    %c0 = arith.constant 0 : index
    %c0_0 = arith.constant 0 : index
    %0 = vector.load %arg0[%c0, %c0_0] : memref<16x3xf32, #tpu.memory_space<vmem>>, vector<16x3xf32>
    %c0_1 = arith.constant 0 : index
    %c0_2 = arith.constant 0 : index
    %1 = vector.load %arg1[%c0_1, %c0_2] : memref<3x384xf32, #tpu.memory_space<vmem>>, vector<3x384xf32>
    %cst = arith.constant dense<0.000000e+00> : vector<16x384xf32>
    %2 = tpu.matmul %0, %1, %cst {dimension_numbers = #tpu.dot_dimension_numbers<[1], [0], [0], [1], [0, 0, 1, 1], [], []>} : vector<16x3xf32>, vector<3x384xf32>, vector<16x384xf32> -> vector<16x384xf32>
    %c0_3 = arith.constant 0 : index
    %c0_4 = arith.constant 0 : index
    %3 = vector.load %arg2[%c0_3, %c0_4] : memref<1x384xf32, #tpu.memory_space<vmem>>, vector<1x384xf32>
    %4 = vector.broadcast %3 : vector<1x384xf32> to vector<16x384xf32>
    %5 = arith.addf %2, %4 : vector<16x384xf32>
    %c0_5 = arith.constant 0 : index
    %c0_6 = arith.constant 0 : index
    %6 = vector.load %arg3[%c0_5, %c0_6] : memref<16x384xf32, #tpu.memory_space<vmem>>, vector<16x384xf32>
    tpu.vector_store %arg3[%c0_5, %c0_6], %5 {strides = array<i32>} : memref<16x384xf32, #tpu.memory_space<vmem>>, vector<16x384xf32>,
    return
  }
}

</mosaic_0001>

<llo_original>
// kernel: tpu_custom_call.1
$region0: #{tpu_custom_call.1}
  #allocation0 [shape = 'u32[]', space=smem, size = 0x4, offset = 0x4, fixed_abs, tag = 'smem constant byte address 0x4 - core index']
  #allocation1 [shape = 'u32[144,128]{1,0:T(1,128)}', space=vmem, size = 0x12000, scoped, tag = 'internal scratch']
  %s0 = inlined_call_operand.vmem [shape: f32[16,3], index: 0, kind: input, shape index: {}]
  %s1 = inlined_call_operand.vmem [shape: f32[3,384], index: 1, kind: input, shape index: {}]
  %s2 = inlined_call_operand.vmem [shape: f32[1,384], index: 2, kind: input, shape index: {}]
  %s3 = inlined_call_operand.hbm [shape: f32[16,384], index: 3, kind: output, shape index: {}]
  %s4 = sld [smem:[#allocation0]]
  $region22: #{tpu_custom_call.1} parent=0
    _
  %s6 = ssub.s32 1, %s4
  %s7 = scalar_select 0, %s6, %s4
  $region1: #{tpu_custom_call.1} parent=0
    #allocation2 [shape = 'u8[24576]{0}', space=vmem, size = 0x6000, scoped, tag = 'output window, operand 0, single buffered']
    #allocation3 [shape = 's32[1]{0}', space=sflag, size = 0x4, scoped, tag = 'scoped memory for tpu_custom_call.1']
    %8 = vsyncpa [#allocation3], 0
    // Predicated region
    $region2: #{tpu_custom_call.1} parent=1 // pred_check
      _
    $region3: #{tpu_custom_call.1} parent=1 // pred_check_branch
      %10 = sbr.rel (0) target = $region5
    $region4: #{tpu_custom_call.1} parent=1 // pred_region
      _
    $region5: #{tpu_custom_call.1} parent=1 // pred_fallthru
      _
    // Predicated region
    $region6: #{tpu_custom_call.1} parent=1 // pred_check
      _
    $region7: #{tpu_custom_call.1} parent=1 // pred_check_branch
      %12 = sbr.rel (0) target = $region9
    $region8: #{tpu_custom_call.1} parent=1 // pred_region
      _
    $region9: #{tpu_custom_call.1} parent=1 // pred_fallthru
      _
    // Predicated region
    $region10: #{tpu_custom_call.1} parent=1 // pred_check
      _
    $region11: #{tpu_custom_call.1} parent=1 // pred_check_branch
      %14 = sbr.rel (0) target = $region13
    $region12: #{tpu_custom_call.1} parent=1 // pred_region
      _
    $region13: #{tpu_custom_call.1} parent=1 // pred_fallthru
      _
    %v15 = vld [vmem:[%s0] sm:$0xff]
    %v16 = vld [vmem:[%s0 + $0x8] sm:$0xff]
    %v17 = vld [vmem:[%s1] sm:$0x77]
    %v18 = vld [vmem:[%s1 + $0x8] sm:$0x7]
    %v19 = vld [vmem:[%s2] sm:$0x7]
    %v21 = vlaneseq
    %v22 = vshrl.u32 %v21, 7
    %v23 = vsub.s32 0, %v22
    %v24 = vrot.slane %v19, %v23
    %v25 = vlaneseq
    %v26 = vshrl.u32 %v25, 7
    %v27 = vsub.s32 1, %v26
    %v28 = vrot.slane %v19, %v27
    %v29 = vlaneseq
    %v30 = vshrl.u32 %v29, 7
    %v31 = vsub.s32 2, %v30
    %v32 = vrot.slane %v19, %v31
    %v38 = vcombine.high %v17, %v17
    %vm39 = vcmask 23552
    %v41 = vsel %vm39, %v15, 0
    %v44 = vsel %vm39, %v16, 0
    %vm46 = vcmask 1042432
    %v47 = vsel %vm46, %v17, 0
    %v49 = vsel %vm46, %v38, 0
    %v51 = vsel %vm46, %v18, 0
    %53 = vmatprep.subr.mxu0 %v49
    %54 = vmatpush1.msra.mxu0 %v47
    %55 = vmatprep.subr.mxu0 0.0
    %56 = vmatpush1.msra.mxu0 0.0
    %57 = vmatprep.subr.mxu0 0.0
    %58 = vmatpush1.msra.mxu0 0.0
    %59 = vmatprep.subr.mxu0 0.0
    %60 = vmatpush1.msra.mxu0 0.0
    %61 = vmatprep.subr.mxu0 0.0
    %62 = vmatpush1.msra.mxu0 0.0
    %63 = vmatprep.subr.mxu0 0.0
    %64 = vmatpush1.msra.mxu0 0.0
    %65 = vmatprep.subr.mxu0 0.0
    %66 = vmatpush1.msra.mxu0 0.0
    %67 = vmatprep.subr.mxu0 0.0
    %68 = vmatpush1.msra.mxu0 0.0
    %69 = vmatprep.subr.mxu0 0.0
    %70 = vmatpush1.msra.mxu0 0.0
    %71 = vmatprep.subr.mxu0 0.0
    %72 = vmatpush1.msra.mxu0 0.0
    %73 = vmatprep.subr.mxu0 0.0
    %74 = vmatpush1.msra.mxu0 0.0
    %75 = vmatprep.subr.mxu0 0.0
    %76 = vmatpush1.msra.mxu0 0.0
    %77 = vmatprep.subr.mxu0 0.0
    %78 = vmatpush1.msra.mxu0 0.0
    %79 = vmatprep.subr.mxu0 0.0
    %80 = vmatpush1.msra.mxu0 0.0
    %81 = vmatprep.subr.mxu0 0.0
    %82 = vmatpush1.msra.mxu0 0.0
    %83 = vmatprep.subr.mxu0 0.0
    %84 = vmatpush1.msra.mxu0 0.0
    %85 = vmatprep.subr.mxu0 0.0
    %86 = vmatpush1.msra.mxu0 0.0
    %87 = vmatprep.subr.mxu0 0.0
    %88 = vmatpush1.msra.mxu0 0.0
    %89 = vmatprep.subr.mxu0 0.0
    %90 = vmatpush1.msra.mxu0 0.0
    %91 = vmatprep.subr.mxu0 0.0
    %92 = vmatpush1.msra.mxu0 0.0
    %93 = vmatprep.subr.mxu0 0.0
    %94 = vmatpush1.msra.mxu0 0.0
    %95 = vmatprep.subr.mxu0 0.0
    %96 = vmatpush1.msra.mxu0 0.0
    %97 = vmatprep.subr.mxu0 0.0
    %98 = vmatpush1.msra.mxu0 0.0
    %99 = vmatprep.subr.mxu0 0.0
    %100 = vmatpush1.msra.mxu0 0.0
    %101 = vmatprep.subr.mxu0 0.0
    %102 = vmatpush1.msra.mxu0 0.0
    %103 = vmatprep.subr.mxu0 0.0
    %104 = vmatpush1.msra.mxu0 0.0
    %105 = vmatprep.subr.mxu0 0.0
    %106 = vmatpush1.msra.mxu0 0.0
    %107 = vmatprep.subr.mxu0 0.0
    %108 = vmatpush1.msra.mxu0 0.0
    %109 = vmatprep.subr.mxu0 0.0
    %110 = vmatpush1.msra.mxu0 0.0
    %111 = vmatprep.subr.mxu0 0.0
    %112 = vmatpush1.msra.mxu0 0.0
    %113 = vmatprep.subr.mxu0 0.0
    %114 = vmatpush1.msra.mxu0 0.0
    %115 = vmatprep.subr.mxu0 0.0
    %116 = vmatpush1.msra.mxu0 0.0
    %117 = vmatprep.mubr.f32.mxu0 0.0
    %118 = vmatmul.mubr.f32.gmra.mrb[0].mxu0 %v41
    %v119 = vpop.f32.mrb[0].mxu0
    %v120 = vadd.f32 %v24, %v119
    %v121 = vpop.f32.mrb[0].mxu0
    %v122 = vadd.f32 %v28, %v121
    %123 = vmatprep.mubr.f32.mxu0 0.0
    %124 = vmatmul.mubr.f32.gmra.mrb[0].mxu0 %v44
    %v125 = vpop.f32.mrb[0].mxu0
    %v126 = vadd.f32 %v24, %v125
    %v127 = vpop.f32.mrb[0].mxu0
    %v128 = vadd.f32 %v28, %v127
    %129 = vdwg.mxu0
    %130 = vmatprep.subr.mxu0 0.0
    %131 = vmatpush1.msra.mxu0 %v51
    %132 = vmatprep.subr.mxu0 0.0
    %133 = vmatpush1.msra.mxu0 0.0
    %134 = vmatprep.subr.mxu0 0.0
    %135 = vmatpush1.msra.mxu0 0.0
    %136 = vmatprep.subr.mxu0 0.0
    %137 = vmatpush1.msra.mxu0 0.0
    %138 = vmatprep.subr.mxu0 0.0
    %139 = vmatpush1.msra.mxu0 0.0
    %140 = vmatprep.subr.mxu0 0.0
    %141 = vmatpush1.msra.mxu0 0.0
    %142 = vmatprep.subr.mxu0 0.0
    %143 = vmatpush1.msra.mxu0 0.0
    %144 = vmatprep.subr.mxu0 0.0
    %145 = vmatpush1.msra.mxu0 0.0
    %146 = vmatprep.subr.mxu0 0.0
    %147 = vmatpush1.msra.mxu0 0.0
    %148 = vmatprep.subr.mxu0 0.0
    %149 = vmatpush1.msra.mxu0 0.0
    %150 = vmatprep.subr.mxu0 0.0
    %151 = vmatpush1.msra.mxu0 0.0
    %152 = vmatprep.subr.mxu0 0.0
    %153 = vmatpush1.msra.mxu0 0.0
    %154 = vmatprep.subr.mxu0 0.0
    %155 = vmatpush1.msra.mxu0 0.0
    %156 = vmatprep.subr.mxu0 0.0
    %157 = vmatpush1.msra.mxu0 0.0
    %158 = vmatprep.subr.mxu0 0.0
    %159 = vmatpush1.msra.mxu0 0.0
    %160 = vmatprep.subr.mxu0 0.0
    %161 = vmatpush1.msra.mxu0 0.0
    %162 = vmatprep.subr.mxu0 0.0
    %163 = vmatpush1.msra.mxu0 0.0
    %164 = vmatprep.subr.mxu0 0.0
    %165 = vmatpush1.msra.mxu0 0.0
    %166 = vmatprep.subr.mxu0 0.0
    %167 = vmatpush1.msra.mxu0 0.0
    %168 = vmatprep.subr.mxu0 0.0
    %169 = vmatpush1.msra.mxu0 0.0
    %170 = vmatprep.subr.mxu0 0.0
    %171 = vmatpush1.msra.mxu0 0.0
    %172 = vmatprep.subr.mxu0 0.0
    %173 = vmatpush1.msra.mxu0 0.0
    %174 = vmatprep.subr.mxu0 0.0
    %175 = vmatpush1.msra.mxu0 0.0
    %176 = vmatprep.subr.mxu0 0.0
    %177 = vmatpush1.msra.mxu0 0.0
    %178 = vmatprep.subr.mxu0 0.0
    %179 = vmatpush1.msra.mxu0 0.0
    %180 = vmatprep.subr.mxu0 0.0
    %181 = vmatpush1.msra.mxu0 0.0
    %182 = vmatprep.subr.mxu0 0.0
    %183 = vmatpush1.msra.mxu0 0.0
    %184 = vmatprep.subr.mxu0 0.0
    %185 = vmatpush1.msra.mxu0 0.0
    %186 = vmatprep.subr.mxu0 0.0
    %187 = vmatpush1.msra.mxu0 0.0
    %188 = vmatprep.subr.mxu0 0.0
    %189 = vmatpush1.msra.mxu0 0.0
    %190 = vmatprep.subr.mxu0 0.0
    %191 = vmatpush1.msra.mxu0 0.0
    %192 = vmatprep.subr.mxu0 0.0
    %193 = vmatpush1.msra.mxu0 0.0
    %194 = vmatprep.mubr.f32.mxu0 0.0
    %195 = vmatmul.mubr.f32.gmra.mrb[0].mxu0 %v41
    %v196 = vpop.f32.mrb[0].mxu0
    %v197 = vadd.f32 %v32, %v196
    %v198 = vpop.f32.mrb[0].mxu0
    %199 = vmatprep.mubr.f32.mxu0 0.0
    %200 = vmatmul.mubr.f32.gmra.mrb[0].mxu0 %v44
    %v201 = vpop.f32.mrb[0].mxu0
    %v202 = vadd.f32 %v32, %v201
    %v203 = vpop.f32.mrb[0].mxu0
    %204 = vdwg.mxu0
    %205 = vst [vmem:[#allocation2] sm:$0xff] %v120
    %206 = vst [vmem:[#allocation2 + $0x8] sm:$0xff] %v122
    %207 = vst [vmem:[#allocation2 + $0x10] sm:$0xff] %v197
    %208 = vst [vmem:[#allocation2 + $0x18] sm:$0xff] %v126
    %209 = vst [vmem:[#allocation2 + $0x20] sm:$0xff] %v128
    %210 = vst [vmem:[#allocation2 + $0x28] sm:$0xff] %v202
    // Predicated region
    $region14: #{tpu_custom_call.1} parent=1 // pred_check
      _
    $region15: #{tpu_custom_call.1} parent=1 // pred_check_branch
      %212 = sbr.rel (0) target = $region17
    $region16: #{tpu_custom_call.1} parent=1 // pred_region
      %s214 = ssub.s32 768, 768
      %215 = vsyncadd [#allocation3], %s214
      %s216 = sshll.u32 [#allocation2], 4
      %s217 = int_to_ptr.vmem [resolvable:$true] %s216
      %222 = dma.vmem_to_hbm [thread:$0]  %s217, 768, %s3, [#allocation3], 384, 384, 24
    $region17: #{tpu_custom_call.1} parent=1 // pred_fallthru
      _
    // Predicated region
    $region18: #{tpu_custom_call.1} parent=1 // pred_check
      _
    $region19: #{tpu_custom_call.1} parent=1 // pred_check_branch
      %224 = sbr.rel (0) target = $region21
    $region20: #{tpu_custom_call.1} parent=1 // pred_region
      %225 = dma.done [#allocation3], 768
    $region21: #{tpu_custom_call.1} parent=1 // pred_fallthru
      _
    %226 = vsyncpa [#allocation3], 1

</llo_original>
